<compile_context>
chip_gen: v5e
topology: v5e:2x2
jax: 0.10.0
libtpu: 0.0.40
codegen_flags: <defaults>
</compile_context>

<pallas_src>
import functools

import jax
import jax.numpy as jnp
from jax.experimental import pallas as pl
from jax.experimental.pallas import tpu as pltpu


_ROW_TILE_TARGET = 256


def _round_up(x, m):
    return ((x + m - 1) // m) * m


def _col_tile_target():
    # Double-buffered streamed working set (preds f32 + y f32 + mask bool) must
    # fit under the default scoped-VMEM limit: 16 MiB on v5e, 32 MiB on v6e/v7x.
    try:
        kind = jax.devices()[0].device_kind.lower()
    except Exception:  # pragma: no cover - defensive
        kind = ""
    if "v6" in kind or "v7" in kind:
        return 4096   # 2 * (4 + 4 + 1) MiB = 18 MiB at TB=256
    return 2048       # 2 * (2 + 2 + 0.5) MiB = 9 MiB (safe on v5e)


def _pick_row_tile(B):
    if B <= 32:
        return B  # single tile; block dim == full array dim is always legal
    # >= 2 row tiles so the 'parallel' axis feeds both v7x TensorCores; keep
    # the tile a multiple of 32 (bool/int8 sublane packing). Ragged last row
    # block is fine: OOB rows are garbage in / dropped on write.
    return min(_ROW_TILE_TARGET, _round_up(pl.cdiv(B, 2), 32))


def _pick_col_tile(T):
    target = _col_tile_target()
    if T <= target:
        return T      # single column block; block dim == full array dim is legal
    return target     # multiple of 128; ragged last block masked in-kernel


def _mse_loss_kernel(preds_ref, y_ref, mask_ref, seqlen_ref, out_ref, acc_ref,
                     *, log_flag, t_total, col_tile):
    k = pl.program_id(1)

    @pl.when(k == 0)
    def _():
        acc_ref[...] = jnp.zeros_like(acc_ref)

    rows = preds_ref.shape[0]
    ragged_cols = (t_total % col_tile) != 0
    n_chunks = col_tile // 128
    rem = col_tile % 128          # nonzero only when col_tile == T (single block)
    assert not (ragged_cols and rem), "ragged column edge implies 128-aligned tile"

    if ragged_cols:
        # Lane index within a 128-wide chunk; compared against a per-chunk
        # scalar limit to invalidate lanes past the true T (OOB lanes hold
        # garbage from the edge DMA).
        lane_idx = jax.lax.broadcasted_iota(jnp.int32, (rows, 128), 1)

    def sq_diff(col_lo, col_hi):
        sl = slice(col_lo, col_hi)
        p = preds_ref[:, sl].astype(jnp.float32)
        t = y_ref[:, sl].astype(jnp.float32)
        if log_flag:
            # EUP transcendental; hides under the HBM-bound pipeline.
            p = jnp.log(p)
            t = jnp.log(t)
        m = mask_ref[:, sl]
        if m.dtype != jnp.bool_:
            m = m != 0
        if ragged_cols:
            limit = t_total - k * col_tile - col_lo   # #valid lanes in chunk
            m = jnp.logical_and(m, lane_idx < limit)
        # Select (NOT a multiply-by-mask) so NaN/-inf from log() of masked or
        # out-of-bounds positions never leak into the sum.
        d = jnp.where(m, t - p, jnp.float32(0.0))
        return d * d

    if n_chunks > 0:
        # Lane-dense accumulation: fold 128-wide chunks with pure VPU adds;
        # the cross-lane XLU reduction is deferred to the final grid step.
        partial = sq_diff(0, 128)
        for c in range(1, n_chunks):
            partial = partial + sq_diff(c * 128, (c + 1) * 128)
        acc_ref[...] += partial
    if rem > 0:
        # Tiny unaligned T (< one full lane chunk remainder): reduce into lane 0.
        dd = sq_diff(n_chunks * 128, col_tile)
        acc_ref[:, 0:1] += jnp.sum(dd, axis=1, keepdims=True)

    @pl.when(k == pl.num_programs(1) - 1)
    def _():
        row_sum = jnp.sum(acc_ref[...], axis=1, keepdims=True)   # one XLU reduce
        seqlen = jnp.maximum(seqlen_ref[...], jnp.float32(1.0))  # clamp(min=1)
        out_ref[...] = row_sum / seqlen


def mse_loss(preds, y, mask, seq_length, log_flag=False, *,
             row_tile=None, col_tile=None):
    """preds, y: (B, T) float; mask: (B, T) bool; seq_length: (B,). Returns scalar."""
    B, T = preds.shape
    TB = row_tile if row_tile is not None else _pick_row_tile(B)
    TT = col_tile if col_tile is not None else _pick_col_tile(T)
    grid = (pl.cdiv(B, TB), pl.cdiv(T, TT))

    # Only the tiny (B, 1) seq_length array gets any wrapper-side reshaping.
    seqlen = seq_length.astype(jnp.float32).reshape(B, 1)

    kernel = functools.partial(_mse_loss_kernel, log_flag=log_flag,
                               t_total=T, col_tile=TT)

    per_row = pl.pallas_call(
        kernel,
        out_shape=jax.ShapeDtypeStruct((B, 1), jnp.float32),
        grid=grid,
        in_specs=[
            pl.BlockSpec((TB, TT), lambda i, k: (i, k)),   # preds
            pl.BlockSpec((TB, TT), lambda i, k: (i, k)),   # y
            pl.BlockSpec((TB, TT), lambda i, k: (i, k)),   # mask (bool, 1 B/elem)
            pl.BlockSpec((TB, 1), lambda i, k: (i, 0)),    # seq_length
        ],
        out_specs=pl.BlockSpec((TB, 1), lambda i, k: (i, 0)),
        scratch_shapes=[pltpu.VMEM((TB, 128), jnp.float32)],
        compiler_params=pltpu.CompilerParams(
            dimension_semantics=("parallel", "arbitrary")),
    )(preds, y, mask, seqlen)

    # Scalar mean over the true batch (tiny; done in the JAX wrapper).
    return jnp.sum(per_row) / jnp.float32(B)


def _reference(preds, y, mask, seq_length, log_flag=False):
    preds = preds.astype(jnp.float32)
    y = y.astype(jnp.float32)
    if log_flag:
        preds = jnp.log(preds)
        y = jnp.log(y)
    preds = jnp.where(mask, preds, 0.0)
    y = jnp.where(mask, y, 0.0)
    loss = jnp.sum((y - preds) ** 2, axis=1) / jnp.maximum(
        seq_length.astype(jnp.float32), 1.0
    )
    return jnp.mean(loss)


if __name__ == "__main__":
    key = jax.random.PRNGKey(0)
    keys = jax.random.split(key, 12)

    # --- test 1: aligned small shape, log_flag=False ---
    B, T = 8, 128
    preds = jax.random.normal(keys[0], (B, T), dtype=jnp.float32)
    y = jax.random.normal(keys[1], (B, T), dtype=jnp.float32)
    seq_length = jax.random.randint(keys[2], (B,), 0, T + 1, dtype=jnp.int32)
    mask = jnp.arange(T)[None, :] < seq_length[:, None]

    out = jax.block_until_ready(mse_loss(preds, y, mask, seq_length, log_flag=False))
    ref = _reference(preds, y, mask, seq_length, log_flag=False)
    assert jnp.allclose(out, ref, rtol=1e-5, atol=1e-5), (out, ref)

    # --- test 2: tiny unaligned shape (TT == T < 128 path), log_flag=True ---
    B2, T2 = 4, 96
    preds2 = jnp.abs(jax.random.normal(keys[3], (B2, T2), dtype=jnp.float32)) + 0.1
    y2 = jnp.abs(jax.random.normal(keys[4], (B2, T2), dtype=jnp.float32)) + 0.1
    seq_length2 = jax.random.randint(keys[5], (B2,), 0, T2 + 1, dtype=jnp.int32)
    mask2 = jnp.arange(T2)[None, :] < seq_length2[:, None]

    out2 = jax.block_until_ready(mse_loss(preds2, y2, mask2, seq_length2, log_flag=True))
    ref2 = _reference(preds2, y2, mask2, seq_length2, log_flag=True)
    assert jnp.allclose(out2, ref2, rtol=1e-5, atol=1e-5), (out2, ref2)

    # --- test 3: ragged rows + ragged columns + multi-step accumulation,
    #             random (non-length) mask, NaN-producing masked values ---
    B3, T3 = 40, 200
    mask3 = jax.random.bernoulli(keys[6], 0.7, (B3, T3))
    vals_p = jnp.abs(jax.random.normal(keys[7], (B3, T3), dtype=jnp.float32)) + 0.1
    vals_y = jnp.abs(jax.random.normal(keys[8], (B3, T3), dtype=jnp.float32)) + 0.1
    preds3 = jnp.where(mask3, vals_p, -1.0)   # log(-1) = NaN at masked positions
    y3 = jnp.where(mask3, vals_y, -1.0)       # must be blocked by the select
    seq_length3 = jax.random.randint(keys[9], (B3,), 0, T3 + 1, dtype=jnp.int32)

    out3 = jax.block_until_ready(
        mse_loss(preds3, y3, mask3, seq_length3, log_flag=True, col_tile=128))
    ref3 = _reference(preds3, y3, mask3, seq_length3, log_flag=True)
    assert jnp.allclose(out3, ref3, rtol=1e-5, atol=1e-5), (out3, ref3)

    print("KERNEL_OK")
</pallas_src>

<mosaic_0001>
module attributes {stable_mosaic.version = 11 : i64} {
  func.func @_mse_loss_kernel(%arg0: i32, %arg1: i32, %arg2: memref<8x128xf32, #tpu.memory_space<vmem>>, %arg3: memref<8x128xf32, #tpu.memory_space<vmem>>, %arg4: memref<8x128xi32, #tpu.memory_space<vmem>>, %arg5: memref<8x1xf32, #tpu.memory_space<vmem>>, %arg6: memref<8x1xf32, #tpu.memory_space<vmem>>, %arg7: memref<8x128xf32, #tpu.memory_space<vmem>>) attributes {dimension_semantics = [#tpu.dimension_semantics<parallel>, #tpu.dimension_semantics<arbitrary>], iteration_bounds = array<i64: 1, 1>, scalar_prefetch = 0 : i64, scratch_operands = 1 : i64, tpu.core_type = #tpu.core_type<tc>, window_params = [{transform_indices = @transform_0, window_bounds = array<i64: 8, 128>}, {transform_indices = @transform_1, window_bounds = array<i64: 8, 128>}, {transform_indices = @transform_2, window_bounds = array<i64: 8, 128>}, {transform_indices = @transform_3, window_bounds = array<i64: 8, 1>}, {transform_indices = @transform_4, window_bounds = array<i64: 8, 1>}]} {
    %c0_i32 = arith.constant 0 : i32
    %0 = arith.cmpi eq, %arg1, %c0_i32 : i32
    %1 = arith.extui %0 : i1 to i32
    %c0_i32_0 = arith.constant 0 : i32
    %2 = arith.cmpi ne, %1, %c0_i32_0 : i32
    scf.if %2 {
      %cst_13 = arith.constant 0.000000e+00 : f32
      %17 = vector.broadcast %cst_13 : f32 to vector<8x128xf32>
      %c0_14 = arith.constant 0 : index
      %c0_15 = arith.constant 0 : index
      %18 = vector.load %arg7[%c0_14, %c0_15] : memref<8x128xf32, #tpu.memory_space<vmem>>, vector<8x128xf32>
      tpu.vector_store %arg7[%c0_14, %c0_15], %17 {strides = array<i32>} : memref<8x128xf32, #tpu.memory_space<vmem>>, vector<8x128xf32>,
    } else {
    }
    %c0 = arith.constant 0 : index
    %c0_1 = arith.constant 0 : index
    %3 = vector.load %arg2[%c0, %c0_1] : memref<8x128xf32, #tpu.memory_space<vmem>>, vector<8x128xf32>
    %c0_2 = arith.constant 0 : index
    %c0_3 = arith.constant 0 : index
    %4 = vector.load %arg3[%c0_2, %c0_3] : memref<8x128xf32, #tpu.memory_space<vmem>>, vector<8x128xf32>
    %c0_4 = arith.constant 0 : index
    %c0_5 = arith.constant 0 : index
    %5 = vector.load %arg4[%c0_4, %c0_5] : memref<8x128xi32, #tpu.memory_space<vmem>>, vector<8x128xi32>
    %cst = arith.constant dense<0> : vector<8x128xi32>
    %6 = arith.cmpi ne, %5, %cst : vector<8x128xi32>
    %7 = arith.subf %4, %3 : vector<8x128xf32>
    %cst_6 = arith.constant 0.000000e+00 : f32
    %8 = vector.broadcast %cst_6 : f32 to vector<8x128xf32>
    %9 = arith.select %6, %7, %8 : vector<8x128xi1>, vector<8x128xf32>
    %10 = arith.mulf %9, %9 : vector<8x128xf32>
    %c0_7 = arith.constant 0 : index
    %c0_8 = arith.constant 0 : index
    %11 = vector.load %arg7[%c0_7, %c0_8] : memref<8x128xf32, #tpu.memory_space<vmem>>, vector<8x128xf32>
    %12 = arith.addf %11, %10 : vector<8x128xf32>
    %c0_9 = arith.constant 0 : index
    %c0_10 = arith.constant 0 : index
    %13 = vector.load %arg7[%c0_9, %c0_10] : memref<8x128xf32, #tpu.memory_space<vmem>>, vector<8x128xf32>
    tpu.vector_store %arg7[%c0_9, %c0_10], %12 {strides = array<i32>} : memref<8x128xf32, #tpu.memory_space<vmem>>, vector<8x128xf32>,
    %c0_i32_11 = arith.constant 0 : i32
    %14 = arith.cmpi eq, %arg1, %c0_i32_11 : i32
    %15 = arith.extui %14 : i1 to i32
    %c0_i32_12 = arith.constant 0 : i32
    %16 = arith.cmpi ne, %15, %c0_i32_12 : i32
    scf.if %16 {
      %c0_13 = arith.constant 0 : index
      %c0_14 = arith.constant 0 : index
      %17 = vector.load %arg7[%c0_13, %c0_14] : memref<8x128xf32, #tpu.memory_space<vmem>>, vector<8x128xf32>
      %cst_15 = arith.constant dense<0.000000e+00> : vector<8xf32>
      %18 = vector.multi_reduction <add>, %17, %cst_15 [1] : vector<8x128xf32> to vector<8xf32>
      %19 = vector.shape_cast %18 : vector<8xf32> to vector<8x1xf32>
      %c0_16 = arith.constant 0 : index
      %c0_17 = arith.constant 0 : index
      %20 = vector.load %arg5[%c0_16, %c0_17] : memref<8x1xf32, #tpu.memory_space<vmem>>, vector<8x1xf32>
      %cst_18 = arith.constant 1.000000e+00 : f32
      %21 = vector.broadcast %cst_18 : f32 to vector<8x1xf32>
      %22 = arith.maximumf %20, %21 : vector<8x1xf32>
      %23 = arith.divf %19, %22 : vector<8x1xf32>
      %c0_19 = arith.constant 0 : index
      %c0_20 = arith.constant 0 : index
      %24 = vector.load %arg6[%c0_19, %c0_20] : memref<8x1xf32, #tpu.memory_space<vmem>>, vector<8x1xf32>
      tpu.vector_store %arg6[%c0_19, %c0_20], %23 {strides = array<i32>} : memref<8x1xf32, #tpu.memory_space<vmem>>, vector<8x1xf32>,
    } else {
    }
    return
  }
  func.func @transform_0(%arg0: i32, %arg1: i32) -> (i32, i32) {
    %c0_i32 = arith.constant 0 : i32
    return %arg0, %arg1 : i32, i32
  }
  func.func @transform_1(%arg0: i32, %arg1: i32) -> (i32, i32) {
    %c0_i32 = arith.constant 0 : i32
    return %arg0, %arg1 : i32, i32
  }
  func.func @transform_2(%arg0: i32, %arg1: i32) -> (i32, i32) {
    %c0_i32 = arith.constant 0 : i32
    return %arg0, %arg1 : i32, i32
  }
  func.func @transform_3(%arg0: i32, %arg1: i32) -> (i32, i32) {
    %c0_i32 = arith.constant 0 : i32
    %c0_i32_0 = arith.constant 0 : i32
    return %arg0, %c0_i32 : i32, i32
  }
  func.func @transform_4(%arg0: i32, %arg1: i32) -> (i32, i32) {
    %c0_i32 = arith.constant 0 : i32
    %c0_i32_0 = arith.constant 0 : i32
    return %arg0, %c0_i32 : i32, i32
  }
}

</mosaic_0001>

<llo_original>
// kernel: tpu_custom_call.1
$region0: #{tpu_custom_call.1}
  #allocation0 [shape = 'u32[]', space=smem, size = 0x4, offset = 0x4, fixed_abs, tag = 'smem constant byte address 0x4 - core index']
  #allocation1 [shape = 'u32[72,128]{1,0:T(1,128)}', space=vmem, size = 0x9000, scoped, tag = 'internal scratch']
  #allocation2 [shape = 'f32[8,128]{1,0:T(8,128)}', space=vmem, size = 0x1000, scoped, tag = 'scratch operand']
  %s0 = inlined_call_operand.vmem [shape: f32[8,128], index: 0, kind: input, shape index: {}]
  %s1 = inlined_call_operand.vmem [shape: f32[8,128], index: 1, kind: input, shape index: {}]
  %s2 = inlined_call_operand.vmem [shape: s32[8,128], index: 2, kind: input, shape index: {}]
  %s3 = inlined_call_operand.vmem [shape: f32[8,1], index: 3, kind: input, shape index: {}]
  %s4 = inlined_call_operand.vmem [shape: f32[8,1], index: 4, kind: output, shape index: {}]
  %s5 = sld [smem:[#allocation0]]
  $region34: #{tpu_custom_call.1} parent=0
    _
  %s7 = ssub.s32 1, %s5
  %s8 = scalar_select 0, %s7, %s5
  // Predicated region
  $region2: #{tpu_custom_call.1} parent=0 // pred_check
    _
  $region3: #{tpu_custom_call.1} parent=0 // pred_check_branch
    %10 = sbr.rel (0) target = $region5
  $region4: #{tpu_custom_call.1} parent=0 // pred_region
    _
  $region5: #{tpu_custom_call.1} parent=0 // pred_fallthru
    _
  // Predicated region
  $region6: #{tpu_custom_call.1} parent=0 // pred_check
    _
  $region7: #{tpu_custom_call.1} parent=0 // pred_check_branch
    %12 = sbr.rel (0) target = $region9
  $region8: #{tpu_custom_call.1} parent=0 // pred_region
    _
  $region9: #{tpu_custom_call.1} parent=0 // pred_fallthru
    _
  // Predicated region
  $region10: #{tpu_custom_call.1} parent=0 // pred_check
    _
  $region11: #{tpu_custom_call.1} parent=0 // pred_check_branch
    %14 = sbr.rel (0) target = $region13
  $region12: #{tpu_custom_call.1} parent=0 // pred_region
    _
  $region13: #{tpu_custom_call.1} parent=0 // pred_fallthru
    _
  // Predicated region
  $region14: #{tpu_custom_call.1} parent=0 // pred_check
    _
  $region15: #{tpu_custom_call.1} parent=0 // pred_check_branch
    %16 = sbr.rel (0) target = $region17
  $region16: #{tpu_custom_call.1} parent=0 // pred_region
    _
  $region17: #{tpu_custom_call.1} parent=0 // pred_fallthru
    _
  %p17 = scmp.eq.s32.totalorder 0, 0
  // Predicated region
  $region18: #{tpu_custom_call.1} parent=0 // pred_check
    %p18 = pneg %p17
  $region19: #{tpu_custom_call.1} parent=0 // pred_check_branch
    %20 = sbr.rel (%p18) target = $region21
  $region20: #{tpu_custom_call.1} parent=0 // pred_region
    %21 = vst [vmem:[#allocation2] sm:$0xff] 0.0
  $region21: #{tpu_custom_call.1} parent=0 // pred_fallthru
    _
  %v22 = vld [vmem:[%s0] sm:$0xff]
  %v23 = vld [vmem:[%s1] sm:$0xff]
  %v24 = vld [vmem:[%s2] sm:$0xff]
  %vm25 = vcmp.ne.s32.totalorder %v24, 0
  %v26 = vsub.f32 %v23, %v22
  %v27 = vsel %vm25, %v26, 0.0
  %v28 = vmul.f32 %v27, %v27
  %v29 = vld [vmem:[#allocation2] sm:$0xff]
  %v30 = vadd.f32 %v29, %v28
  %31 = vst [vmem:[#allocation2] sm:$0xff] %v30
  // Predicated region
  $region22: #{tpu_custom_call.1} parent=0 // pred_check
    %p32 = pneg %p17
  $region23: #{tpu_custom_call.1} parent=0 // pred_check_branch
    %34 = sbr.rel (%p32) target = $region25
  $region24: #{tpu_custom_call.1} parent=0 // pred_region
    %v35 = vld [vmem:[#allocation2] sm:$0xff]
    %36 = vadd.xlane.f32.xlu0 %v35
    %v37 = vpop.xlane.xlu0 %36
    %v38 = vld [vmem:[%s3] sm:$0xff]
    %v39 = vmax.f32 %v38, 1.0
    %v40 = vrcp.pop %v39
    %v41 = vmul.f32 %v39, %v40
    %v42 = vsub.f32 1.0, %v41
    %v43 = vmul.f32 %v40, %v42
    %v44 = vadd.f32 %v40, %v43
    %vm45 = vweird.f32 %v39
    %vm46 = vweird.f32 %v40
    %vm47 = vmor %vm45, %vm46
    %v48 = vsel %vm47, %v40, %v44
    %v49 = vand.u32 2147483647, %v39
    %vm50 = vcmp.eq.f32.partialorder %v49, 8.507059e+37
    %v51 = vand.u32 %v39, 2147483648
    %v52 = vor.u32 1.1754944e-38, %v51
    %v53 = vsel %vm50, %v52, %v48
    %v54 = vmul.f32 %v37, %v53
    %vm55 = vcmask 7168
    %56 = vst.msk [vmem:[%s4] sm:$0xff] %vm55, %v54
  $region25: #{tpu_custom_call.1} parent=0 // pred_fallthru
    _
  // Predicated region
  $region26: #{tpu_custom_call.1} parent=0 // pred_check
    _
  $region27: #{tpu_custom_call.1} parent=0 // pred_check_branch
    %58 = sbr.rel (0) target = $region29
  $region28: #{tpu_custom_call.1} parent=0 // pred_region
    _
  $region29: #{tpu_custom_call.1} parent=0 // pred_fallthru
    _
  // Predicated region
  $region30: #{tpu_custom_call.1} parent=0 // pred_check
    _
  $region31: #{tpu_custom_call.1} parent=0 // pred_check_branch
    %60 = sbr.rel (0) target = $region33
  $region32: #{tpu_custom_call.1} parent=0 // pred_region
    _
  $region33: #{tpu_custom_call.1} parent=0 // pred_fallthru
    _

</llo_original>
